<compile_context>
chip_gen: v6e
topology: v6e:2x2x1
jax: 0.10.0
libtpu: 0.0.40
codegen_flags: <defaults>
</compile_context>

<pallas_src>
import functools
import math

import jax
import jax.numpy as jnp
from jax.experimental import pallas as pl
from jax.experimental.pallas import tpu as pltpu


def _round_up(x, m):
    return ((x + m - 1) // m) * m


def _embed_gather_kernel(ids_ref, lut_hbm, out_ref, row_buf, sem, *,
                         tile_n, scale):
    """Double-buffered HBM row gather for one tile of token embeddings.

    ids_ref : (n_pad,) int32 in SMEM (scalar-prefetched, full chunk)
    lut_hbm : (vocab, d_pad) ref left in HBM (pl.ANY, manual DMA only)
    out_ref : (tile_n, d_pad) VMEM output tile (pipelined by BlockSpec)
    row_buf : (2, tile_n, d_pad) VMEM scratch (double-buffered landing slots)
    sem     : DMA semaphore array of shape (2,), one per slot
    """
    o = pl.program_id(0)
    i = pl.program_id(1)
    n_inner = pl.num_programs(1)
    tile = o * n_inner + i          # global tile index
    slot = i % 2
    nxt = 1 - slot

    def issue(tile_idx, to_slot):
        # Issue all row-gather DMAs of `tile_idx` into slot `to_slot`; they
        # run concurrently against sem[to_slot].  Ids were clamped in the
        # wrapper, so no per-row clip here.
        base = tile_idx * tile_n

        def body(t, carry):
            tok = ids_ref[base + t]
            pltpu.make_async_copy(
                lut_hbm.at[tok], row_buf.at[to_slot, t], sem.at[to_slot]
            ).start()
            return carry

        jax.lax.fori_loop(0, tile_n, body, 0, unroll=8)

    # Prime: first inner step of this outer block gathers its own tile.
    @pl.when(i == 0)
    def _prime():
        issue(tile, slot)

    # Prefetch: gather the NEXT inner tile into the other slot while the
    # current tile's DMAs complete / are consumed.
    @pl.when(i + 1 < n_inner)
    def _prefetch():
        issue(tile + 1, nxt)

    # Drain the current slot with ONE full-tile-sized wait.  DMA semaphores
    # count bytes and every row copy above targeted sem[slot], so a single
    # descriptor covering tile_n * d_pad elements is equivalent to tile_n
    # per-row waits.  src == dst only to size the descriptor; wait() moves no
    # data.
    pltpu.make_async_copy(row_buf.at[slot], row_buf.at[slot],
                          sem.at[slot]).wait()

    out_ref[...] = row_buf[slot] * scale


def _embed_chunk(ids, lut_p, *, tile_n, scale, vmem_limit):
    """Gather embeddings for one chunk of (already clamped) flat token ids."""
    n_c = ids.shape[0]
    _, d_pad = lut_p.shape

    n_tiles = pl.cdiv(n_c, tile_n)
    n_pad = n_tiles * tile_n
    if n_pad != n_c:
        # Padded tokens gather row 0; their rows are sliced off below.
        ids = jnp.pad(ids, (0, n_pad - n_c))

    # Outer axis shards token tiles across TensorCores (v7x megacore); the
    # inner axis must stay sequential for the cross-tile prefetch to be valid.
    n_outer = 2 if (n_tiles >= 4 and n_tiles % 2 == 0) else 1
    n_inner = n_tiles // n_outer

    kernel = functools.partial(_embed_gather_kernel, tile_n=tile_n, scale=scale)

    out = pl.pallas_call(
        kernel,
        out_shape=jax.ShapeDtypeStruct((n_pad, d_pad), lut_p.dtype),
        grid_spec=pltpu.PrefetchScalarGridSpec(
            num_scalar_prefetch=1,                     # ids -> SMEM
            grid=(n_outer, n_inner),
            in_specs=[
                pl.BlockSpec(memory_space=pl.ANY),     # LUT stays in HBM
            ],
            out_specs=pl.BlockSpec(
                (tile_n, d_pad), lambda o, i, ids_ref: (o * n_inner + i, 0)),
            scratch_shapes=[
                pltpu.VMEM((2, tile_n, d_pad), lut_p.dtype),  # landing slots
                pltpu.SemaphoreType.DMA((2,)),                # per-slot sems
            ],
        ),
        compiler_params=pltpu.CompilerParams(
            dimension_semantics=("parallel", "arbitrary"),
            vmem_limit_bytes=vmem_limit,
        ),
    )(ids, lut_p)

    return out[:n_c]


def embeddings_forward(x, lut, *, tile_n=256, max_tokens_per_call=65536):
    """x: int [B, S] token ids; lut: [vocab, d_model] -> [B, S, d_model].

    Equivalent to nn.Embedding(vocab, d_model)(x) * sqrt(d_model).
    Note: out-of-range ids are clamped (nn.Embedding would raise).
    """
    b, s = x.shape
    vocab, d_model = lut.shape
    n = b * s
    scale = math.sqrt(d_model)
    itemsize = lut.dtype.itemsize

    # Lane-dense feature dim: pad d_model up to a multiple of 128 so output
    # stores are unmasked vst; sliced off at the end.
    d_pad = max(128, _round_up(d_model, 128))
    lut_p = lut if d_pad == d_model else jnp.pad(
        lut, ((0, 0), (0, d_pad - d_model)))

    # VMEM budget (v7x-safe: 64 MiB physical per TC).  Footprint is
    # row_buf (2 slots) + BlockSpec double-buffered output = 4 * tile * bytes.
    budget = 44 << 20
    cap = max(8, (budget // (4 * d_pad * itemsize)) // 8 * 8)
    tile_n = max(8, _round_up(min(int(tile_n), cap, _round_up(n, 8)), 8))
    vmem_limit = int(min(max(4 * tile_n * d_pad * itemsize + (2 << 20),
                             8 << 20), 48 << 20))
    # TODO(synk): for very large d_model where even a single prefetch slot is
    # too big, fall back to DMAing rows directly into out_ref (no row_buf,
    # no cross-tile prefetch) and scaling in place.

    # Clamp ids once here (instead of per-row in the kernel's issue loop).
    ids = jnp.clip(x.reshape(n).astype(jnp.int32), 0, vocab - 1)

    # Chunk the call so the scalar-prefetched 1-D SMEM id array (padded to
    # next_pow2(4*n)) never exhausts SMEM for long B*S.
    chunk = max(tile_n, (max_tokens_per_call // tile_n) * tile_n)
    outs = []
    for start in range(0, n, chunk):
        outs.append(_embed_chunk(ids[start:start + chunk], lut_p,
                                 tile_n=tile_n, scale=scale,
                                 vmem_limit=vmem_limit))
    out_flat = outs[0] if len(outs) == 1 else jnp.concatenate(outs, axis=0)

    return out_flat[:, :d_model].reshape(b, s, d_model)


if __name__ == "__main__":
    # Small shapes consistent with the module: d_model=32, vocab=32, batch=2, seq=8.
    d_model, vocab = 32, 32
    batch, seq = 2, 8

    key = jax.random.PRNGKey(0)
    k_lut, k_ids = jax.random.split(key)

    # nn.Embedding default init: N(0, 1)
    lut = jax.random.normal(k_lut, (vocab, d_model), dtype=jnp.float32)
    x = jax.random.randint(k_ids, (batch, seq), 0, vocab, dtype=jnp.int32)

    # tile_n=8 -> 2 tiles: exercises prime + cross-tile prefetch + final tile.
    out = embeddings_forward(x, lut, tile_n=8)
    out = jax.block_until_ready(out)

    ref = jnp.take(lut, x, axis=0) * math.sqrt(d_model)
    assert out.shape == (batch, seq, d_model)
    assert jnp.allclose(out, ref, atol=1e-5, rtol=1e-5)

    # Second config: ragged token count (padding path) + dual-axis grid
    # (n_outer=2 "parallel" outer, 5 inner steps per outer block).
    b2, s2, vocab2, d2 = 2, 37, 50, 32
    k_lut2, k_ids2 = jax.random.split(jax.random.PRNGKey(0))
    lut2 = jax.random.normal(k_lut2, (vocab2, d2), dtype=jnp.float32)
    x2 = jax.random.randint(k_ids2, (b2, s2), 0, vocab2, dtype=jnp.int32)
    out2 = jax.block_until_ready(embeddings_forward(x2, lut2, tile_n=8))
    ref2 = jnp.take(lut2, x2, axis=0) * math.sqrt(d2)
    assert out2.shape == (b2, s2, d2)
    assert jnp.allclose(out2, ref2, atol=1e-5, rtol=1e-5)

    print("KERNEL_OK")
</pallas_src>

<mosaic_0001>
module attributes {stable_mosaic.version = 11 : i64} {
  func.func @_embed_gather_kernel(%arg0: i32, %arg1: i32, %arg2: memref<16xi32, #tpu.memory_space<smem>>, %arg3: memref<32x128xf32, #tpu.memory_space<any>>, %arg4: memref<8x128xf32, #tpu.memory_space<vmem>>, %arg5: memref<2x8x128xf32, #tpu.memory_space<vmem>>, %arg6: memref<2x!tpu.dma_semaphore, #tpu.memory_space<semaphore_mem>>) attributes {dimension_semantics = [#tpu.dimension_semantics<parallel>, #tpu.dimension_semantics<arbitrary>], iteration_bounds = array<i64: 1, 2>, scalar_prefetch = 1 : i64, scratch_operands = 2 : i64, tpu.core_type = #tpu.core_type<tc>, window_params = [{}, {transform_indices = @transform_1, window_bounds = array<i64: 8, 128>}]} {
    %c2_i32 = arith.constant 2 : i32
    %0 = arith.muli %arg0, %c2_i32 : i32
    %1 = arith.addi %0, %arg1 : i32
    %c2_i32_0 = arith.constant 2 : i32
    %c0_i32 = arith.constant 0 : i32
    %2 = arith.cmpi eq, %c2_i32_0, %c0_i32 : i32
    %c1_i32 = arith.constant 1 : i32
    %3 = arith.select %2, %c1_i32, %c2_i32_0 : i32
    %4 = arith.remsi %arg1, %3 : i32
    %c0_i32_1 = arith.constant 0 : i32
    %5 = arith.cmpi ne, %4, %c0_i32_1 : i32
    %c0_i32_2 = arith.constant 0 : i32
    %6 = arith.cmpi slt, %4, %c0_i32_2 : i32
    %c0_i32_3 = arith.constant 0 : i32
    %7 = arith.cmpi slt, %3, %c0_i32_3 : i32
    %8 = arith.xori %6, %7 : i1
    %9 = arith.andi %8, %5 : i1
    %10 = arith.addi %4, %3 : i32
    %11 = arith.select %9, %10, %4 : i32
    %c1_i32_4 = arith.constant 1 : i32
    %12 = arith.subi %c1_i32_4, %11 : i32
    %c0_i32_5 = arith.constant 0 : i32
    %13 = arith.cmpi eq, %arg1, %c0_i32_5 : i32
    %14 = arith.extui %13 : i1 to i32
    %c0_i32_6 = arith.constant 0 : i32
    %15 = arith.cmpi ne, %14, %c0_i32_6 : i32
    scf.if %15 {
      %c8_i32 = arith.constant 8 : i32
      %32 = arith.muli %1, %c8_i32 : i32
      %c0_i32_17 = arith.constant 0 : i32
      %33 = arith.addi %32, %c0_i32_17 : i32
      %34 = arith.index_cast %33 : i32 to index
      %35 = memref.load %arg2[%34] : memref<16xi32, #tpu.memory_space<smem>>
      %c0_i32_18 = arith.constant 0 : i32
      %36 = tpu.memref_slice %arg3[%35, %c0_i32_18] : memref<32x128xf32, #tpu.memory_space<any>> -> memref<1x128xf32, #tpu.memory_space<any>>
      %37 = tpu.memref_squeeze %36 : memref<1x128xf32, #tpu.memory_space<any>> -> memref<128xf32, #tpu.memory_space<any>>
      %c0_i32_19 = arith.constant 0 : i32
      %38 = tpu.memref_slice %arg5[%11, %c0_i32_17, %c0_i32_19] : memref<2x8x128xf32, #tpu.memory_space<vmem>> -> memref<1x1x128xf32, #tpu.memory_space<vmem>>
      %39 = tpu.memref_squeeze %38 : memref<1x1x128xf32, #tpu.memory_space<vmem>> -> memref<128xf32, #tpu.memory_space<vmem>>
      %40 = tpu.memref_slice %arg6[%11] : memref<2x!tpu.dma_semaphore, #tpu.memory_space<semaphore_mem>> -> memref<1x!tpu.dma_semaphore, #tpu.memory_space<semaphore_mem>>
      %41 = tpu.memref_squeeze %40 : memref<1x!tpu.dma_semaphore, #tpu.memory_space<semaphore_mem>> -> memref<!tpu.dma_semaphore, #tpu.memory_space<semaphore_mem>>
      tpu.enqueue_dma source(%37 : memref<128xf32, #tpu.memory_space<any>>) target(%39 : memref<128xf32, #tpu.memory_space<vmem>>) target_semaphore(%41 : memref<!tpu.dma_semaphore, #tpu.memory_space<semaphore_mem>>)
      %c1_i32_20 = arith.constant 1 : i32
      %42 = arith.addi %32, %c1_i32_20 : i32
      %43 = arith.index_cast %42 : i32 to index
      %44 = memref.load %arg2[%43] : memref<16xi32, #tpu.memory_space<smem>>
      %c0_i32_21 = arith.constant 0 : i32
      %45 = tpu.memref_slice %arg3[%44, %c0_i32_21] : memref<32x128xf32, #tpu.memory_space<any>> -> memref<1x128xf32, #tpu.memory_space<any>>
      %46 = tpu.memref_squeeze %45 : memref<1x128xf32, #tpu.memory_space<any>> -> memref<128xf32, #tpu.memory_space<any>>
      %c0_i32_22 = arith.constant 0 : i32
      %47 = tpu.memref_slice %arg5[%11, %c1_i32_20, %c0_i32_22] : memref<2x8x128xf32, #tpu.memory_space<vmem>> -> memref<1x1x128xf32, #tpu.memory_space<vmem>>
      %48 = tpu.memref_squeeze %47 : memref<1x1x128xf32, #tpu.memory_space<vmem>> -> memref<128xf32, #tpu.memory_space<vmem>>
      %49 = tpu.memref_slice %arg6[%11] : memref<2x!tpu.dma_semaphore, #tpu.memory_space<semaphore_mem>> -> memref<1x!tpu.dma_semaphore, #tpu.memory_space<semaphore_mem>>
      %50 = tpu.memref_squeeze %49 : memref<1x!tpu.dma_semaphore, #tpu.memory_space<semaphore_mem>> -> memref<!tpu.dma_semaphore, #tpu.memory_space<semaphore_mem>>
      tpu.enqueue_dma source(%46 : memref<128xf32, #tpu.memory_space<any>>) target(%48 : memref<128xf32, #tpu.memory_space<vmem>>) target_semaphore(%50 : memref<!tpu.dma_semaphore, #tpu.memory_space<semaphore_mem>>)
      %c2_i32_23 = arith.constant 2 : i32
      %51 = arith.addi %32, %c2_i32_23 : i32
      %52 = arith.index_cast %51 : i32 to index
      %53 = memref.load %arg2[%52] : memref<16xi32, #tpu.memory_space<smem>>
      %c0_i32_24 = arith.constant 0 : i32
      %54 = tpu.memref_slice %arg3[%53, %c0_i32_24] : memref<32x128xf32, #tpu.memory_space<any>> -> memref<1x128xf32, #tpu.memory_space<any>>
      %55 = tpu.memref_squeeze %54 : memref<1x128xf32, #tpu.memory_space<any>> -> memref<128xf32, #tpu.memory_space<any>>
      %c0_i32_25 = arith.constant 0 : i32
      %56 = tpu.memref_slice %arg5[%11, %c2_i32_23, %c0_i32_25] : memref<2x8x128xf32, #tpu.memory_space<vmem>> -> memref<1x1x128xf32, #tpu.memory_space<vmem>>
      %57 = tpu.memref_squeeze %56 : memref<1x1x128xf32, #tpu.memory_space<vmem>> -> memref<128xf32, #tpu.memory_space<vmem>>
      %58 = tpu.memref_slice %arg6[%11] : memref<2x!tpu.dma_semaphore, #tpu.memory_space<semaphore_mem>> -> memref<1x!tpu.dma_semaphore, #tpu.memory_space<semaphore_mem>>
      %59 = tpu.memref_squeeze %58 : memref<1x!tpu.dma_semaphore, #tpu.memory_space<semaphore_mem>> -> memref<!tpu.dma_semaphore, #tpu.memory_space<semaphore_mem>>
      tpu.enqueue_dma source(%55 : memref<128xf32, #tpu.memory_space<any>>) target(%57 : memref<128xf32, #tpu.memory_space<vmem>>) target_semaphore(%59 : memref<!tpu.dma_semaphore, #tpu.memory_space<semaphore_mem>>)
      %c3_i32 = arith.constant 3 : i32
      %60 = arith.addi %32, %c3_i32 : i32
      %61 = arith.index_cast %60 : i32 to index
      %62 = memref.load %arg2[%61] : memref<16xi32, #tpu.memory_space<smem>>
      %c0_i32_26 = arith.constant 0 : i32
      %63 = tpu.memref_slice %arg3[%62, %c0_i32_26] : memref<32x128xf32, #tpu.memory_space<any>> -> memref<1x128xf32, #tpu.memory_space<any>>
      %64 = tpu.memref_squeeze %63 : memref<1x128xf32, #tpu.memory_space<any>> -> memref<128xf32, #tpu.memory_space<any>>
      %c0_i32_27 = arith.constant 0 : i32
      %65 = tpu.memref_slice %arg5[%11, %c3_i32, %c0_i32_27] : memref<2x8x128xf32, #tpu.memory_space<vmem>> -> memref<1x1x128xf32, #tpu.memory_space<vmem>>
      %66 = tpu.memref_squeeze %65 : memref<1x1x128xf32, #tpu.memory_space<vmem>> -> memref<128xf32, #tpu.memory_space<vmem>>
      %67 = tpu.memref_slice %arg6[%11] : memref<2x!tpu.dma_semaphore, #tpu.memory_space<semaphore_mem>> -> memref<1x!tpu.dma_semaphore, #tpu.memory_space<semaphore_mem>>
      %68 = tpu.memref_squeeze %67 : memref<1x!tpu.dma_semaphore, #tpu.memory_space<semaphore_mem>> -> memref<!tpu.dma_semaphore, #tpu.memory_space<semaphore_mem>>
      tpu.enqueue_dma source(%64 : memref<128xf32, #tpu.memory_space<any>>) target(%66 : memref<128xf32, #tpu.memory_space<vmem>>) target_semaphore(%68 : memref<!tpu.dma_semaphore, #tpu.memory_space<semaphore_mem>>)
      %c4_i32 = arith.constant 4 : i32
      %69 = arith.addi %32, %c4_i32 : i32
      %70 = arith.index_cast %69 : i32 to index
      %71 = memref.load %arg2[%70] : memref<16xi32, #tpu.memory_space<smem>>
      %c0_i32_28 = arith.constant 0 : i32
      %72 = tpu.memref_slice %arg3[%71, %c0_i32_28] : memref<32x128xf32, #tpu.memory_space<any>> -> memref<1x128xf32, #tpu.memory_space<any>>
      %73 = tpu.memref_squeeze %72 : memref<1x128xf32, #tpu.memory_space<any>> -> memref<128xf32, #tpu.memory_space<any>>
      %c0_i32_29 = arith.constant 0 : i32
      %74 = tpu.memref_slice %arg5[%11, %c4_i32, %c0_i32_29] : memref<2x8x128xf32, #tpu.memory_space<vmem>> -> memref<1x1x128xf32, #tpu.memory_space<vmem>>
      %75 = tpu.memref_squeeze %74 : memref<1x1x128xf32, #tpu.memory_space<vmem>> -> memref<128xf32, #tpu.memory_space<vmem>>
      %76 = tpu.memref_slice %arg6[%11] : memref<2x!tpu.dma_semaphore, #tpu.memory_space<semaphore_mem>> -> memref<1x!tpu.dma_semaphore, #tpu.memory_space<semaphore_mem>>
      %77 = tpu.memref_squeeze %76 : memref<1x!tpu.dma_semaphore, #tpu.memory_space<semaphore_mem>> -> memref<!tpu.dma_semaphore, #tpu.memory_space<semaphore_mem>>
      tpu.enqueue_dma source(%73 : memref<128xf32, #tpu.memory_space<any>>) target(%75 : memref<128xf32, #tpu.memory_space<vmem>>) target_semaphore(%77 : memref<!tpu.dma_semaphore, #tpu.memory_space<semaphore_mem>>)
      %c5_i32 = arith.constant 5 : i32
      %78 = arith.addi %32, %c5_i32 : i32
      %79 = arith.index_cast %78 : i32 to index
      %80 = memref.load %arg2[%79] : memref<16xi32, #tpu.memory_space<smem>>
      %c0_i32_30 = arith.constant 0 : i32
      %81 = tpu.memref_slice %arg3[%80, %c0_i32_30] : memref<32x128xf32, #tpu.memory_space<any>> -> memref<1x128xf32, #tpu.memory_space<any>>
      %82 = tpu.memref_squeeze %81 : memref<1x128xf32, #tpu.memory_space<any>> -> memref<128xf32, #tpu.memory_space<any>>
      %c0_i32_31 = arith.constant 0 : i32
      %83 = tpu.memref_slice %arg5[%11, %c5_i32, %c0_i32_31] : memref<2x8x128xf32, #tpu.memory_space<vmem>> -> memref<1x1x128xf32, #tpu.memory_space<vmem>>
      %84 = tpu.memref_squeeze %83 : memref<1x1x128xf32, #tpu.memory_space<vmem>> -> memref<128xf32, #tpu.memory_space<vmem>>
      %85 = tpu.memref_slice %arg6[%11] : memref<2x!tpu.dma_semaphore, #tpu.memory_space<semaphore_mem>> -> memref<1x!tpu.dma_semaphore, #tpu.memory_space<semaphore_mem>>
      %86 = tpu.memref_squeeze %85 : memref<1x!tpu.dma_semaphore, #tpu.memory_space<semaphore_mem>> -> memref<!tpu.dma_semaphore, #tpu.memory_space<semaphore_mem>>
      tpu.enqueue_dma source(%82 : memref<128xf32, #tpu.memory_space<any>>) target(%84 : memref<128xf32, #tpu.memory_space<vmem>>) target_semaphore(%86 : memref<!tpu.dma_semaphore, #tpu.memory_space<semaphore_mem>>)
      %c6_i32 = arith.constant 6 : i32
      %87 = arith.addi %32, %c6_i32 : i32
      %88 = arith.index_cast %87 : i32 to index
      %89 = memref.load %arg2[%88] : memref<16xi32, #tpu.memory_space<smem>>
      %c0_i32_32 = arith.constant 0 : i32
      %90 = tpu.memref_slice %arg3[%89, %c0_i32_32] : memref<32x128xf32, #tpu.memory_space<any>> -> memref<1x128xf32, #tpu.memory_space<any>>
      %91 = tpu.memref_squeeze %90 : memref<1x128xf32, #tpu.memory_space<any>> -> memref<128xf32, #tpu.memory_space<any>>
      %c0_i32_33 = arith.constant 0 : i32
      %92 = tpu.memref_slice %arg5[%11, %c6_i32, %c0_i32_33] : memref<2x8x128xf32, #tpu.memory_space<vmem>> -> memref<1x1x128xf32, #tpu.memory_space<vmem>>
      %93 = tpu.memref_squeeze %92 : memref<1x1x128xf32, #tpu.memory_space<vmem>> -> memref<128xf32, #tpu.memory_space<vmem>>
      %94 = tpu.memref_slice %arg6[%11] : memref<2x!tpu.dma_semaphore, #tpu.memory_space<semaphore_mem>> -> memref<1x!tpu.dma_semaphore, #tpu.memory_space<semaphore_mem>>
      %95 = tpu.memref_squeeze %94 : memref<1x!tpu.dma_semaphore, #tpu.memory_space<semaphore_mem>> -> memref<!tpu.dma_semaphore, #tpu.memory_space<semaphore_mem>>
      tpu.enqueue_dma source(%91 : memref<128xf32, #tpu.memory_space<any>>) target(%93 : memref<128xf32, #tpu.memory_space<vmem>>) target_semaphore(%95 : memref<!tpu.dma_semaphore, #tpu.memory_space<semaphore_mem>>)
      %c7_i32 = arith.constant 7 : i32
      %96 = arith.addi %32, %c7_i32 : i32
      %97 = arith.index_cast %96 : i32 to index
      %98 = memref.load %arg2[%97] : memref<16xi32, #tpu.memory_space<smem>>
      %c0_i32_34 = arith.constant 0 : i32
      %99 = tpu.memref_slice %arg3[%98, %c0_i32_34] : memref<32x128xf32, #tpu.memory_space<any>> -> memref<1x128xf32, #tpu.memory_space<any>>
      %100 = tpu.memref_squeeze %99 : memref<1x128xf32, #tpu.memory_space<any>> -> memref<128xf32, #tpu.memory_space<any>>
      %c0_i32_35 = arith.constant 0 : i32
      %101 = tpu.memref_slice %arg5[%11, %c7_i32, %c0_i32_35] : memref<2x8x128xf32, #tpu.memory_space<vmem>> -> memref<1x1x128xf32, #tpu.memory_space<vmem>>
      %102 = tpu.memref_squeeze %101 : memref<1x1x128xf32, #tpu.memory_space<vmem>> -> memref<128xf32, #tpu.memory_space<vmem>>
      %103 = tpu.memref_slice %arg6[%11] : memref<2x!tpu.dma_semaphore, #tpu.memory_space<semaphore_mem>> -> memref<1x!tpu.dma_semaphore, #tpu.memory_space<semaphore_mem>>
      %104 = tpu.memref_squeeze %103 : memref<1x!tpu.dma_semaphore, #tpu.memory_space<semaphore_mem>> -> memref<!tpu.dma_semaphore, #tpu.memory_space<semaphore_mem>>
      tpu.enqueue_dma source(%100 : memref<128xf32, #tpu.memory_space<any>>) target(%102 : memref<128xf32, #tpu.memory_space<vmem>>) target_semaphore(%104 : memref<!tpu.dma_semaphore, #tpu.memory_space<semaphore_mem>>)
      %c8_i32_36 = arith.constant 8 : i32
    } else {
    }
    %c1_i32_7 = arith.constant 1 : i32
    %16 = arith.addi %arg1, %c1_i32_7 : i32
    %c2_i32_8 = arith.constant 2 : i32
    %17 = arith.cmpi slt, %16, %c2_i32_8 : i32
    %18 = arith.extui %17 : i1 to i32
    %c0_i32_9 = arith.constant 0 : i32
    %19 = arith.cmpi ne, %18, %c0_i32_9 : i32
    scf.if %19 {
      %c1_i32_17 = arith.constant 1 : i32
      %32 = arith.addi %1, %c1_i32_17 : i32
      %c8_i32 = arith.constant 8 : i32
      %33 = arith.muli %32, %c8_i32 : i32
      %c0_i32_18 = arith.constant 0 : i32
      %34 = arith.addi %33, %c0_i32_18 : i32
      %35 = arith.index_cast %34 : i32 to index
      %36 = memref.load %arg2[%35] : memref<16xi32, #tpu.memory_space<smem>>
      %c0_i32_19 = arith.constant 0 : i32
      %37 = tpu.memref_slice %arg3[%36, %c0_i32_19] : memref<32x128xf32, #tpu.memory_space<any>> -> memref<1x128xf32, #tpu.memory_space<any>>
      %38 = tpu.memref_squeeze %37 : memref<1x128xf32, #tpu.memory_space<any>> -> memref<128xf32, #tpu.memory_space<any>>
      %c0_i32_20 = arith.constant 0 : i32
      %39 = tpu.memref_slice %arg5[%12, %c0_i32_18, %c0_i32_20] : memref<2x8x128xf32, #tpu.memory_space<vmem>> -> memref<1x1x128xf32, #tpu.memory_space<vmem>>
      %40 = tpu.memref_squeeze %39 : memref<1x1x128xf32, #tpu.memory_space<vmem>> -> memref<128xf32, #tpu.memory_space<vmem>>
      %41 = tpu.memref_slice %arg6[%12] : memref<2x!tpu.dma_semaphore, #tpu.memory_space<semaphore_mem>> -> memref<1x!tpu.dma_semaphore, #tpu.memory_space<semaphore_mem>>
      %42 = tpu.memref_squeeze %41 : memref<1x!tpu.dma_semaphore, #tpu.memory_space<semaphore_mem>> -> memref<!tpu.dma_semaphore, #tpu.memory_space<semaphore_mem>>
      tpu.enqueue_dma source(%38 : memref<128xf32, #tpu.memory_space<any>>) target(%40 : memref<128xf32, #tpu.memory_space<vmem>>) target_semaphore(%42 : memref<!tpu.dma_semaphore, #tpu.memory_space<semaphore_mem>>)
      %c1_i32_21 = arith.constant 1 : i32
      %43 = arith.addi %33, %c1_i32_21 : i32
      %44 = arith.index_cast %43 : i32 to index
      %45 = memref.load %arg2[%44] : memref<16xi32, #tpu.memory_space<smem>>
      %c0_i32_22 = arith.constant 0 : i32
      %46 = tpu.memref_slice %arg3[%45, %c0_i32_22] : memref<32x128xf32, #tpu.memory_space<any>> -> memref<1x128xf32, #tpu.memory_space<any>>
      %47 = tpu.memref_squeeze %46 : memref<1x128xf32, #tpu.memory_space<any>> -> memref<128xf32, #tpu.memory_space<any>>
      %c0_i32_23 = arith.constant 0 : i32
      %48 = tpu.memref_slice %arg5[%12, %c1_i32_21, %c0_i32_23] : memref<2x8x128xf32, #tpu.memory_space<vmem>> -> memref<1x1x128xf32, #tpu.memory_space<vmem>>
      %49 = tpu.memref_squeeze %48 : memref<1x1x128xf32, #tpu.memory_space<vmem>> -> memref<128xf32, #tpu.memory_space<vmem>>
      %50 = tpu.memref_slice %arg6[%12] : memref<2x!tpu.dma_semaphore, #tpu.memory_space<semaphore_mem>> -> memref<1x!tpu.dma_semaphore, #tpu.memory_space<semaphore_mem>>
      %51 = tpu.memref_squeeze %50 : memref<1x!tpu.dma_semaphore, #tpu.memory_space<semaphore_mem>> -> memref<!tpu.dma_semaphore, #tpu.memory_space<semaphore_mem>>
      tpu.enqueue_dma source(%47 : memref<128xf32, #tpu.memory_space<any>>) target(%49 : memref<128xf32, #tpu.memory_space<vmem>>) target_semaphore(%51 : memref<!tpu.dma_semaphore, #tpu.memory_space<semaphore_mem>>)
      %c2_i32_24 = arith.constant 2 : i32
      %52 = arith.addi %33, %c2_i32_24 : i32
      %53 = arith.index_cast %52 : i32 to index
      %54 = memref.load %arg2[%53] : memref<16xi32, #tpu.memory_space<smem>>
      %c0_i32_25 = arith.constant 0 : i32
      %55 = tpu.memref_slice %arg3[%54, %c0_i32_25] : memref<32x128xf32, #tpu.memory_space<any>> -> memref<1x128xf32, #tpu.memory_space<any>>
      %56 = tpu.memref_squeeze %55 : memref<1x128xf32, #tpu.memory_space<any>> -> memref<128xf32, #tpu.memory_space<any>>
      %c0_i32_26 = arith.constant 0 : i32
      %57 = tpu.memref_slice %arg5[%12, %c2_i32_24, %c0_i32_26] : memref<2x8x128xf32, #tpu.memory_space<vmem>> -> memref<1x1x128xf32, #tpu.memory_space<vmem>>
      %58 = tpu.memref_squeeze %57 : memref<1x1x128xf32, #tpu.memory_space<vmem>> -> memref<128xf32, #tpu.memory_space<vmem>>
      %59 = tpu.memref_slice %arg6[%12] : memref<2x!tpu.dma_semaphore, #tpu.memory_space<semaphore_mem>> -> memref<1x!tpu.dma_semaphore, #tpu.memory_space<semaphore_mem>>
      %60 = tpu.memref_squeeze %59 : memref<1x!tpu.dma_semaphore, #tpu.memory_space<semaphore_mem>> -> memref<!tpu.dma_semaphore, #tpu.memory_space<semaphore_mem>>
      tpu.enqueue_dma source(%56 : memref<128xf32, #tpu.memory_space<any>>) target(%58 : memref<128xf32, #tpu.memory_space<vmem>>) target_semaphore(%60 : memref<!tpu.dma_semaphore, #tpu.memory_space<semaphore_mem>>)
      %c3_i32 = arith.constant 3 : i32
      %61 = arith.addi %33, %c3_i32 : i32
      %62 = arith.index_cast %61 : i32 to index
      %63 = memref.load %arg2[%62] : memref<16xi32, #tpu.memory_space<smem>>
      %c0_i32_27 = arith.constant 0 : i32
      %64 = tpu.memref_slice %arg3[%63, %c0_i32_27] : memref<32x128xf32, #tpu.memory_space<any>> -> memref<1x128xf32, #tpu.memory_space<any>>
      %65 = tpu.memref_squeeze %64 : memref<1x128xf32, #tpu.memory_space<any>> -> memref<128xf32, #tpu.memory_space<any>>
      %c0_i32_28 = arith.constant 0 : i32
      %66 = tpu.memref_slice %arg5[%12, %c3_i32, %c0_i32_28] : memref<2x8x128xf32, #tpu.memory_space<vmem>> -> memref<1x1x128xf32, #tpu.memory_space<vmem>>
      %67 = tpu.memref_squeeze %66 : memref<1x1x128xf32, #tpu.memory_space<vmem>> -> memref<128xf32, #tpu.memory_space<vmem>>
      %68 = tpu.memref_slice %arg6[%12] : memref<2x!tpu.dma_semaphore, #tpu.memory_space<semaphore_mem>> -> memref<1x!tpu.dma_semaphore, #tpu.memory_space<semaphore_mem>>
      %69 = tpu.memref_squeeze %68 : memref<1x!tpu.dma_semaphore, #tpu.memory_space<semaphore_mem>> -> memref<!tpu.dma_semaphore, #tpu.memory_space<semaphore_mem>>
      tpu.enqueue_dma source(%65 : memref<128xf32, #tpu.memory_space<any>>) target(%67 : memref<128xf32, #tpu.memory_space<vmem>>) target_semaphore(%69 : memref<!tpu.dma_semaphore, #tpu.memory_space<semaphore_mem>>)
      %c4_i32 = arith.constant 4 : i32
      %70 = arith.addi %33, %c4_i32 : i32
      %71 = arith.index_cast %70 : i32 to index
      %72 = memref.load %arg2[%71] : memref<16xi32, #tpu.memory_space<smem>>
      %c0_i32_29 = arith.constant 0 : i32
      %73 = tpu.memref_slice %arg3[%72, %c0_i32_29] : memref<32x128xf32, #tpu.memory_space<any>> -> memref<1x128xf32, #tpu.memory_space<any>>
      %74 = tpu.memref_squeeze %73 : memref<1x128xf32, #tpu.memory_space<any>> -> memref<128xf32, #tpu.memory_space<any>>
      %c0_i32_30 = arith.constant 0 : i32
      %75 = tpu.memref_slice %arg5[%12, %c4_i32, %c0_i32_30] : memref<2x8x128xf32, #tpu.memory_space<vmem>> -> memref<1x1x128xf32, #tpu.memory_space<vmem>>
      %76 = tpu.memref_squeeze %75 : memref<1x1x128xf32, #tpu.memory_space<vmem>> -> memref<128xf32, #tpu.memory_space<vmem>>
      %77 = tpu.memref_slice %arg6[%12] : memref<2x!tpu.dma_semaphore, #tpu.memory_space<semaphore_mem>> -> memref<1x!tpu.dma_semaphore, #tpu.memory_space<semaphore_mem>>
      %78 = tpu.memref_squeeze %77 : memref<1x!tpu.dma_semaphore, #tpu.memory_space<semaphore_mem>> -> memref<!tpu.dma_semaphore, #tpu.memory_space<semaphore_mem>>
      tpu.enqueue_dma source(%74 : memref<128xf32, #tpu.memory_space<any>>) target(%76 : memref<128xf32, #tpu.memory_space<vmem>>) target_semaphore(%78 : memref<!tpu.dma_semaphore, #tpu.memory_space<semaphore_mem>>)
      %c5_i32 = arith.constant 5 : i32
      %79 = arith.addi %33, %c5_i32 : i32
      %80 = arith.index_cast %79 : i32 to index
      %81 = memref.load %arg2[%80] : memref<16xi32, #tpu.memory_space<smem>>
      %c0_i32_31 = arith.constant 0 : i32
      %82 = tpu.memref_slice %arg3[%81, %c0_i32_31] : memref<32x128xf32, #tpu.memory_space<any>> -> memref<1x128xf32, #tpu.memory_space<any>>
      %83 = tpu.memref_squeeze %82 : memref<1x128xf32, #tpu.memory_space<any>> -> memref<128xf32, #tpu.memory_space<any>>
      %c0_i32_32 = arith.constant 0 : i32
      %84 = tpu.memref_slice %arg5[%12, %c5_i32, %c0_i32_32] : memref<2x8x128xf32, #tpu.memory_space<vmem>> -> memref<1x1x128xf32, #tpu.memory_space<vmem>>
      %85 = tpu.memref_squeeze %84 : memref<1x1x128xf32, #tpu.memory_space<vmem>> -> memref<128xf32, #tpu.memory_space<vmem>>
      %86 = tpu.memref_slice %arg6[%12] : memref<2x!tpu.dma_semaphore, #tpu.memory_space<semaphore_mem>> -> memref<1x!tpu.dma_semaphore, #tpu.memory_space<semaphore_mem>>
      %87 = tpu.memref_squeeze %86 : memref<1x!tpu.dma_semaphore, #tpu.memory_space<semaphore_mem>> -> memref<!tpu.dma_semaphore, #tpu.memory_space<semaphore_mem>>
      tpu.enqueue_dma source(%83 : memref<128xf32, #tpu.memory_space<any>>) target(%85 : memref<128xf32, #tpu.memory_space<vmem>>) target_semaphore(%87 : memref<!tpu.dma_semaphore, #tpu.memory_space<semaphore_mem>>)
      %c6_i32 = arith.constant 6 : i32
      %88 = arith.addi %33, %c6_i32 : i32
      %89 = arith.index_cast %88 : i32 to index
      %90 = memref.load %arg2[%89] : memref<16xi32, #tpu.memory_space<smem>>
      %c0_i32_33 = arith.constant 0 : i32
      %91 = tpu.memref_slice %arg3[%90, %c0_i32_33] : memref<32x128xf32, #tpu.memory_space<any>> -> memref<1x128xf32, #tpu.memory_space<any>>
      %92 = tpu.memref_squeeze %91 : memref<1x128xf32, #tpu.memory_space<any>> -> memref<128xf32, #tpu.memory_space<any>>
      %c0_i32_34 = arith.constant 0 : i32
      %93 = tpu.memref_slice %arg5[%12, %c6_i32, %c0_i32_34] : memref<2x8x128xf32, #tpu.memory_space<vmem>> -> memref<1x1x128xf32, #tpu.memory_space<vmem>>
      %94 = tpu.memref_squeeze %93 : memref<1x1x128xf32, #tpu.memory_space<vmem>> -> memref<128xf32, #tpu.memory_space<vmem>>
      %95 = tpu.memref_slice %arg6[%12] : memref<2x!tpu.dma_semaphore, #tpu.memory_space<semaphore_mem>> -> memref<1x!tpu.dma_semaphore, #tpu.memory_space<semaphore_mem>>
      %96 = tpu.memref_squeeze %95 : memref<1x!tpu.dma_semaphore, #tpu.memory_space<semaphore_mem>> -> memref<!tpu.dma_semaphore, #tpu.memory_space<semaphore_mem>>
      tpu.enqueue_dma source(%92 : memref<128xf32, #tpu.memory_space<any>>) target(%94 : memref<128xf32, #tpu.memory_space<vmem>>) target_semaphore(%96 : memref<!tpu.dma_semaphore, #tpu.memory_space<semaphore_mem>>)
      %c7_i32 = arith.constant 7 : i32
      %97 = arith.addi %33, %c7_i32 : i32
      %98 = arith.index_cast %97 : i32 to index
      %99 = memref.load %arg2[%98] : memref<16xi32, #tpu.memory_space<smem>>
      %c0_i32_35 = arith.constant 0 : i32
      %100 = tpu.memref_slice %arg3[%99, %c0_i32_35] : memref<32x128xf32, #tpu.memory_space<any>> -> memref<1x128xf32, #tpu.memory_space<any>>
      %101 = tpu.memref_squeeze %100 : memref<1x128xf32, #tpu.memory_space<any>> -> memref<128xf32, #tpu.memory_space<any>>
      %c0_i32_36 = arith.constant 0 : i32
      %102 = tpu.memref_slice %arg5[%12, %c7_i32, %c0_i32_36] : memref<2x8x128xf32, #tpu.memory_space<vmem>> -> memref<1x1x128xf32, #tpu.memory_space<vmem>>
      %103 = tpu.memref_squeeze %102 : memref<1x1x128xf32, #tpu.memory_space<vmem>> -> memref<128xf32, #tpu.memory_space<vmem>>
      %104 = tpu.memref_slice %arg6[%12] : memref<2x!tpu.dma_semaphore, #tpu.memory_space<semaphore_mem>> -> memref<1x!tpu.dma_semaphore, #tpu.memory_space<semaphore_mem>>
      %105 = tpu.memref_squeeze %104 : memref<1x!tpu.dma_semaphore, #tpu.memory_space<semaphore_mem>> -> memref<!tpu.dma_semaphore, #tpu.memory_space<semaphore_mem>>
      tpu.enqueue_dma source(%101 : memref<128xf32, #tpu.memory_space<any>>) target(%103 : memref<128xf32, #tpu.memory_space<vmem>>) target_semaphore(%105 : memref<!tpu.dma_semaphore, #tpu.memory_space<semaphore_mem>>)
      %c8_i32_37 = arith.constant 8 : i32
    } else {
    }
    %c0_i32_10 = arith.constant 0 : i32
    %c0_i32_11 = arith.constant 0 : i32
    %20 = tpu.memref_slice %arg5[%11, %c0_i32_10, %c0_i32_11] : memref<2x8x128xf32, #tpu.memory_space<vmem>> -> memref<1x8x128xf32, #tpu.memory_space<vmem>>
    %21 = tpu.memref_squeeze %20 : memref<1x8x128xf32, #tpu.memory_space<vmem>> -> memref<8x128xf32, #tpu.memory_space<vmem>>
    %c0_i32_12 = arith.constant 0 : i32
    %c0_i32_13 = arith.constant 0 : i32
    %22 = tpu.memref_slice %arg5[%11, %c0_i32_12, %c0_i32_13] : memref<2x8x128xf32, #tpu.memory_space<vmem>> -> memref<1x8x128xf32, #tpu.memory_space<vmem>>
    %23 = tpu.memref_squeeze %22 : memref<1x8x128xf32, #tpu.memory_space<vmem>> -> memref<8x128xf32, #tpu.memory_space<vmem>>
    %24 = tpu.memref_slice %arg6[%11] : memref<2x!tpu.dma_semaphore, #tpu.memory_space<semaphore_mem>> -> memref<1x!tpu.dma_semaphore, #tpu.memory_space<semaphore_mem>>
    %25 = tpu.memref_squeeze %24 : memref<1x!tpu.dma_semaphore, #tpu.memory_space<semaphore_mem>> -> memref<!tpu.dma_semaphore, #tpu.memory_space<semaphore_mem>>
    tpu.wait_dma2 semaphore(%25 : memref<!tpu.dma_semaphore, #tpu.memory_space<semaphore_mem>>) src(%21 : memref<8x128xf32, #tpu.memory_space<vmem>>) dst(%23 : memref<8x128xf32, #tpu.memory_space<vmem>>)
    %26 = arith.index_cast %11 : i32 to index
    %c0 = arith.constant 0 : index
    %c0_14 = arith.constant 0 : index
    %27 = vector.load %arg5[%26, %c0, %c0_14] : memref<2x8x128xf32, #tpu.memory_space<vmem>>, vector<1x8x128xf32>
    %28 = vector.shape_cast %27 : vector<1x8x128xf32> to vector<8x128xf32>
    %cst = arith.constant 5.65685415 : f32
    %29 = vector.broadcast %cst : f32 to vector<8x128xf32>
    %30 = arith.mulf %28, %29 : vector<8x128xf32>
    %c0_15 = arith.constant 0 : index
    %c0_16 = arith.constant 0 : index
    %31 = vector.load %arg4[%c0_15, %c0_16] : memref<8x128xf32, #tpu.memory_space<vmem>>, vector<8x128xf32>
    tpu.vector_store %arg4[%c0_15, %c0_16], %30 {strides = array<i32>} : memref<8x128xf32, #tpu.memory_space<vmem>>, vector<8x128xf32>,
    return
  }
  func.func @transform_1(%arg0: i32, %arg1: i32, %arg2: memref<16xi32, #tpu.memory_space<smem>>) -> (i32, i32) {
    %c2_i32 = arith.constant 2 : i32
    %0 = arith.muli %arg0, %c2_i32 : i32
    %1 = arith.addi %0, %arg1 : i32
    %c0_i32 = arith.constant 0 : i32
    %c0_i32_0 = arith.constant 0 : i32
    return %1, %c0_i32 : i32, i32
  }
}

</mosaic_0001>

<llo_original>
// kernel: tpu_custom_call.1
$region0: #{tpu_custom_call.1}
  #allocation0 [shape = 'u32[]', space=smem, size = 0x4, offset = 0x4, fixed_abs, tag = 'smem constant byte address 0x4 - core index']
  #allocation1 [shape = 'u32[144,128]{1,0:T(1,128)}', space=vmem, size = 0x12000, scoped, tag = 'internal scratch']
  #allocation2 [shape = 'f32[2,8,128]{2,1,0:T(8,128)}', space=vmem, size = 0x2000, scoped, tag = 'scratch operand']
  #allocation3 [shape = 's32[2]{0}', space=sflag, size = 0x8, scoped, tag = 'scratch operand']
  #allocation4 [shape = 's32[1]{0}', space=sflag, size = 0x4, scoped, tag = 'scoped memory for tpu_custom_call.1']
  #allocation5 [shape = 'u8[512]{0}', space=smem, size = 0x200, scoped, tag = 'prefetched SMEM operand 0']
  #allocation8 [shape = 's32[]', space=sflag, size = 0x4, offset = 0, fixed_abs, tag = 'sflag constant byte address 0x0 - dummy sync flag']
  #allocation9 [shape = 's32[]', space=sflag, size = 0x4, offset = 0, fixed_abs, tag = 'sflag constant byte address 0x0 - dummy sync flag']
  #allocation10 [shape = 'u32[]', space=smem, size = 0x4, offset = 0x44, fixed_abs, tag = 'smem constant byte address 0x44 - assertion arg 0']
  #allocation11 [shape = 'u32[]', space=smem, size = 0x4, offset = 0x48, fixed_abs, tag = 'smem constant byte address 0x48 - assertion arg 1']
  #allocation12 [shape = 's32[]', space=sflag, size = 0x4, offset = 0, fixed_abs, tag = 'sflag constant byte address 0x0 - dummy sync flag']
  #allocation13 [shape = 's32[]', space=sflag, size = 0x4, offset = 0, fixed_abs, tag = 'sflag constant byte address 0x0 - dummy sync flag']
  #allocation14 [shape = 's32[]', space=sflag, size = 0x4, offset = 0, fixed_abs, tag = 'sflag constant byte address 0x0 - dummy sync flag']
  #allocation15 [shape = 's32[]', space=sflag, size = 0x4, offset = 0, fixed_abs, tag = 'sflag constant byte address 0x0 - dummy sync flag']
  #allocation16 [shape = 's32[]', space=sflag, size = 0x4, offset = 0, fixed_abs, tag = 'sflag constant byte address 0x0 - dummy sync flag']
  #allocation17 [shape = 's32[]', space=sflag, size = 0x4, offset = 0, fixed_abs, tag = 'sflag constant byte address 0x0 - dummy sync flag']
  #allocation18 [shape = 's32[]', space=sflag, size = 0x4, offset = 0, fixed_abs, tag = 'sflag constant byte address 0x0 - dummy sync flag']
  #allocation19 [shape = 's32[]', space=sflag, size = 0x4, offset = 0, fixed_abs, tag = 'sflag constant byte address 0x0 - dummy sync flag']
  #allocation20 [shape = 's32[]', space=sflag, size = 0x4, offset = 0, fixed_abs, tag = 'sflag constant byte address 0x0 - dummy sync flag']
  #allocation21 [shape = 's32[]', space=sflag, size = 0x4, offset = 0, fixed_abs, tag = 'sflag constant byte address 0x0 - dummy sync flag']
  #allocation22 [shape = 's32[]', space=sflag, size = 0x4, offset = 0, fixed_abs, tag = 'sflag constant byte address 0x0 - dummy sync flag']
  #allocation23 [shape = 's32[]', space=sflag, size = 0x4, offset = 0, fixed_abs, tag = 'sflag constant byte address 0x0 - dummy sync flag']
  #allocation24 [shape = 's32[]', space=sflag, size = 0x4, offset = 0, fixed_abs, tag = 'sflag constant byte address 0x0 - dummy sync flag']
  #allocation25 [shape = 's32[]', space=sflag, size = 0x4, offset = 0, fixed_abs, tag = 'sflag constant byte address 0x0 - dummy sync flag']
  #allocation26 [shape = 's32[]', space=sflag, size = 0x4, offset = 0, fixed_abs, tag = 'sflag constant byte address 0x0 - dummy sync flag']
  #allocation27 [shape = 's32[]', space=sflag, size = 0x4, offset = 0, fixed_abs, tag = 'sflag constant byte address 0x0 - dummy sync flag']
  #allocation28 [shape = 's32[]', space=sflag, size = 0x4, offset = 0, fixed_abs, tag = 'sflag constant byte address 0x0 - dummy sync flag']
  #allocation29 [shape = 's32[]', space=sflag, size = 0x4, offset = 0, fixed_abs, tag = 'sflag constant byte address 0x0 - dummy sync flag']
  #allocation30 [shape = 's32[]', space=sflag, size = 0x4, offset = 0, fixed_abs, tag = 'sflag constant byte address 0x0 - dummy sync flag']
  #allocation31 [shape = 's32[]', space=sflag, size = 0x4, offset = 0, fixed_abs, tag = 'sflag constant byte address 0x0 - dummy sync flag']
  #allocation32 [shape = 's32[]', space=sflag, size = 0x4, offset = 0, fixed_abs, tag = 'sflag constant byte address 0x0 - dummy sync flag']
  #allocation33 [shape = 's32[]', space=sflag, size = 0x4, offset = 0, fixed_abs, tag = 'sflag constant byte address 0x0 - dummy sync flag']
  #allocation34 [shape = 's32[]', space=sflag, size = 0x4, offset = 0, fixed_abs, tag = 'sflag constant byte address 0x0 - dummy sync flag']
  #allocation35 [shape = 's32[]', space=sflag, size = 0x4, offset = 0, fixed_abs, tag = 'sflag constant byte address 0x0 - dummy sync flag']
  #allocation36 [shape = 's32[]', space=sflag, size = 0x4, offset = 0, fixed_abs, tag = 'sflag constant byte address 0x0 - dummy sync flag']
  #allocation37 [shape = 's32[]', space=sflag, size = 0x4, offset = 0, fixed_abs, tag = 'sflag constant byte address 0x0 - dummy sync flag']
  #allocation38 [shape = 's32[]', space=sflag, size = 0x4, offset = 0, fixed_abs, tag = 'sflag constant byte address 0x0 - dummy sync flag']
  #allocation39 [shape = 's32[]', space=sflag, size = 0x4, offset = 0, fixed_abs, tag = 'sflag constant byte address 0x0 - dummy sync flag']
  #allocation40 [shape = 's32[]', space=sflag, size = 0x4, offset = 0, fixed_abs, tag = 'sflag constant byte address 0x0 - dummy sync flag']
  #allocation41 [shape = 's32[]', space=sflag, size = 0x4, offset = 0, fixed_abs, tag = 'sflag constant byte address 0x0 - dummy sync flag']
  %s0 = inlined_call_operand.hbm [shape: s32[16], index: 0, kind: input, shape index: {}]
  %s1 = inlined_call_operand.hbm [shape: f32[32,128], index: 1, kind: input, shape index: {}]
  %s2 = inlined_call_operand.hbm [shape: f32[16,128], index: 2, kind: output, shape index: {}]
  %s3 = sld [smem:[#allocation0]]
  $region97: #{tpu_custom_call.1} parent=0
    _
  %s5 = ssub.s32 1, %s3
  %s6 = scalar_select 0, %s5, %s3
  %8 = dma.hbm_to_smem %s0, 16, [#allocation5], [#allocation4]
  %9 = dma.done [#allocation4], 16
  %10 = sfence
  $region1: #{tpu_custom_call.1} parent=0
    #allocation6 [shape = 'u8[8192]{0}', space=vmem, size = 0x2000, scoped, tag = 'output window, operand 0']
    #allocation7 [shape = 's32[2]{0}', space=sflag, size = 0x8, scoped, tag = 'scoped memory for tpu_custom_call.1']
    %11 = vsyncpa [#allocation7], 0
    %s12 = scalar_lea.sflag [#allocation7], 1
    %13 = vsyncpa %s12, 0
    loop: start=0, step=1, limit=3
    $region2: #{tpu_custom_call.1} parent=1 // loop_pre_header
      _
    $region3: #{tpu_custom_call.1} parent=1 // loop_header
      %s15 = sphi 0, %s19
      %p16 = scmp.ge.s32.totalorder %s15, 3
      %s21 = sphi 0, %s31
      %s22 = sphi 0, %s27
      %s23 = sphi 0, %s21
      %s24 = sphi 0, %s22
      %s38 = sphi 0, %s40
      %s41 = sphi 0, %s38
      %s51 = sphi 0, %s41
    $region4: #{tpu_custom_call.1} parent=1 // loop_header_branch
      %18 = sbr.rel (%p16) target = $region8
    $region5: #{tpu_custom_call.1} parent=1 // loop_body
      %s20 = ssub.s32 %s15, 1
      %s25 = sadd.s32 1, %s22
      %p26 = scmp.ge.s32.totalorder %s25, 2
      %s27 = scalar_select %p26, 0, %s25
      %s28 = sadd.s32 1, %s21
      %s29 = scalar_select %p26, %s28, %s21
      %p30 = scmp.ge.s32.totalorder %s29, 1
      %s31 = scalar_select %p30, 0, %s29
      %s32 = smul.u32 %s21, 2
      %s33 = sadd.s32 %s32, %s22
      %s34 = smul.u32 %s31, 2
      %s35 = sadd.s32 %s34, %s27
      %s36 = ssub.s32 %s33, %s35
      %p37 = scmp.eq.s32.totalorder %s36, 0
      %s39 = sadd.s32 %s38, 1
      %s40 = scalar_select %p37, %s38, %s39
      %p42 = pneg %p37
      %p43 = scmp.eq.s32.totalorder %s15, 1
      %p44 = por %p42, %p43
      %p45 = scmp.ne.s32.totalorder %s38, %s41
      %p46 = scmp.eq.s32.totalorder %s15, 0
      %p47 = por %p45, %p46
      %p48 = scmp.ne.s32.totalorder %s38, %s41
      %p49 = scmp.eq.s32.totalorder %s20, 1
      %p50 = por %p48, %p49
      %p52 = scmp.ne.s32.totalorder %s41, %s51
      %p53 = scmp.eq.s32.totalorder %s20, 0
      %p54 = por %p52, %p53
      %p55 = scmp.lt.s32.totalorder %s15, 2
      // Predicated region
      $region9: #{tpu_custom_call.1} parent=5 // pred_check
        %p56 = pneg %p55
      $region10: #{tpu_custom_call.1} parent=5 // pred_check_branch
        %58 = sbr.rel (%p56) target = $region12
      $region11: #{tpu_custom_call.1} parent=5 // pred_region
        %p59 = pneg %p47
        %p60 = pneg %p44
        %s61 = sand.u32 %s38, 1
        %s62 = scalar_lea.sflag [#allocation7], %s61
        %s63 = sand.u32 %s38, 1
        %s64 = smul.addr %s63, 8
        %s65 = scalar_lea.vmem [#allocation6], %s64
        %s66 = smul.u32 %s21, 2
        %s67 = sadd.s32 %s66, %s22
        %s68 = smul.u32 %s21, 2
        %s69 = sadd.s32 %s68, %s22
        %p70 = scmp.lt.s32.totalorder %s22, 0
        %s71 = ssub.s32 0, %s22
        %s72 = scalar_select %p70, %s71, %s22
        %s73 = sand.u32 %s72, 1
        %s74 = ssub.s32 0, %s73
        %s75 = scalar_select %p70, %s74, %s73
        %p76 = scmp.ne.s32.totalorder %s75, 0
        %p77 = scmp.lt.s32.totalorder %s75, 0
        %p78 = pnand %p77, %p76
        %p79 = pneg %p78
        %s80 = sadd.s32 %s75, 2
        %s81 = scalar_select %p79, %s80, %s75
        %s82 = ssub.s32 1, %s81
        %p83 = scmp.eq.s32.totalorder %s22, 0
        // Predicated region
        $region13: #{tpu_custom_call.1} parent=11 // pred_check
          %p84 = pneg %p83
        $region14: #{tpu_custom_call.1} parent=11 // pred_check_branch
          %86 = sbr.rel (%p84) target = $region16
        $region15: #{tpu_custom_call.1} parent=11 // pred_region
          %s87 = smul.u32 %s69, 8
          %s88 = sld [smem:[#allocation5 + %s87]]
          %s89 = smul.addr %s88, 16
          %s90 = scalar_lea.hbm %s1, %s89
          %s91 = smul.u32 %s81, 8
          %s92 = scalar_lea.vmem [#allocation2], %s91
          %s93 = scalar_lea.sflag [#allocation3], %s81
          // Predicated region
          $region17: #{tpu_custom_call.1} parent=15 // pred_check
            _
          $region18: #{tpu_custom_call.1} parent=15 // pred_check_branch
            %95 = sbr.rel target = $region20
          $region19: #{tpu_custom_call.1} parent=15 // pred_region
            %96 = sst [smem:[#allocation10]] [#allocation9]
            %97 = sst [smem:[#allocation11]] [#allocation8]
          $region20: #{tpu_custom_call.1} parent=15 // pred_fallthru
            _
          %99 = shalt.err (0)
          %s101 = sshll.u32 %s92, 4
          %s102 = int_to_ptr.vmem [resolvable:$true] %s101
          %104 = dma.hbm_to_vmem [thread:$0]  %s90, 16, %s102, %s93
          %s105 = sadd.s32 %s87, 1
          %s106 = sld [smem:[#allocation5 + %s105]]
          %s107 = smul.addr %s106, 16
          %s108 = scalar_lea.hbm %s1, %s107
          %s109 = sadd.s32 1, %s91
          %s110 = scalar_lea.vmem [#allocation2], %s109
          // Predicated region
          $region21: #{tpu_custom_call.1} parent=15 // pred_check
            _
          $region22: #{tpu_custom_call.1} parent=15 // pred_check_branch
            %112 = sbr.rel target = $region24
          $region23: #{tpu_custom_call.1} parent=15 // pred_region
            %113 = sst [smem:[#allocation10]] [#allocation13]
            %114 = sst [smem:[#allocation11]] [#allocation12]
          $region24: #{tpu_custom_call.1} parent=15 // pred_fallthru
            _
          %116 = shalt.err (0)
          %s118 = sshll.u32 %s110, 4
          %s119 = int_to_ptr.vmem [resolvable:$true] %s118
          %121 = dma.hbm_to_vmem [thread:$0]  %s108, 16, %s119, %s93
          %s122 = sadd.s32 %s87, 2
          %s123 = sld [smem:[#allocation5 + %s122]]
          %s124 = smul.addr %s123, 16
          %s125 = scalar_lea.hbm %s1, %s124
          %s126 = sadd.s32 2, %s91
          %s127 = scalar_lea.vmem [#allocation2], %s126
          // Predicated region
          $region25: #{tpu_custom_call.1} parent=15 // pred_check
            _
          $region26: #{tpu_custom_call.1} parent=15 // pred_check_branch
            %129 = sbr.rel target = $region28
          $region27: #{tpu_custom_call.1} parent=15 // pred_region
            %130 = sst [smem:[#allocation10]] [#allocation15]
            %131 = sst [smem:[#allocation11]] [#allocation14]
          $region28: #{tpu_custom_call.1} parent=15 // pred_fallthru
            _
          %133 = shalt.err (0)
          %s135 = sshll.u32 %s127, 4
          %s136 = int_to_ptr.vmem [resolvable:$true] %s135
          %138 = dma.hbm_to_vmem [thread:$0]  %s125, 16, %s136, %s93
          %s139 = sadd.s32 %s87, 3
          %s140 = sld [smem:[#allocation5 + %s139]]
          %s141 = smul.addr %s140, 16
          %s142 = scalar_lea.hbm %s1, %s141
          %s143 = sadd.s32 3, %s91
          %s144 = scalar_lea.vmem [#allocation2], %s143
          // Predicated region
          $region29: #{tpu_custom_call.1} parent=15 // pred_check
            _
          $region30: #{tpu_custom_call.1} parent=15 // pred_check_branch
            %146 = sbr.rel target = $region32
          $region31: #{tpu_custom_call.1} parent=15 // pred_region
            %147 = sst [smem:[#allocation10]] [#allocation17]
            %148 = sst [smem:[#allocation11]] [#allocation16]
          $region32: #{tpu_custom_call.1} parent=15 // pred_fallthru
            _
          %150 = shalt.err (0)
          %s152 = sshll.u32 %s144, 4
          %s153 = int_to_ptr.vmem [resolvable:$true] %s152
          %155 = dma.hbm_to_vmem [thread:$0]  %s142, 16, %s153, %s93
          %s156 = sadd.s32 %s87, 4
          %s157 = sld [smem:[#allocation5 + %s156]]
          %s158 = smul.addr %s157, 16
          %s159 = scalar_lea.hbm %s1, %s158
          %s160 = sadd.s32 4, %s91
          %s161 = scalar_lea.vmem [#allocation2], %s160
          // Predicated region
          $region33: #{tpu_custom_call.1} parent=15 // pred_check
            _
          $region34: #{tpu_custom_call.1} parent=15 // pred_check_branch
            %163 = sbr.rel target = $region36
          $region35: #{tpu_custom_call.1} parent=15 // pred_region
            %164 = sst [smem:[#allocation10]] [#allocation19]
            %165 = sst [smem:[#allocation11]] [#allocation18]
          $region36: #{tpu_custom_call.1} parent=15 // pred_fallthru
            _
          %167 = shalt.err (0)
          %s169 = sshll.u32 %s161, 4
          %s170 = int_to_ptr.vmem [resolvable:$true] %s169
          %172 = dma.hbm_to_vmem [thread:$0]  %s159, 16, %s170, %s93
          %s173 = sadd.s32 %s87, 5
          %s174 = sld [smem:[#allocation5 + %s173]]
          %s175 = smul.addr %s174, 16
          %s176 = scalar_lea.hbm %s1, %s175
          %s177 = sadd.s32 5, %s91
          %s178 = scalar_lea.vmem [#allocation2], %s177
          // Predicated region
          $region37: #{tpu_custom_call.1} parent=15 // pred_check
            _
          $region38: #{tpu_custom_call.1} parent=15 // pred_check_branch
            %180 = sbr.rel target = $region40
          $region39: #{tpu_custom_call.1} parent=15 // pred_region
            %181 = sst [smem:[#allocation10]] [#allocation21]
            %182 = sst [smem:[#allocation11]] [#allocation20]
          $region40: #{tpu_custom_call.1} parent=15 // pred_fallthru
            _
          %184 = shalt.err (0)
          %s186 = sshll.u32 %s178, 4
          %s187 = int_to_ptr.vmem [resolvable:$true] %s186
          %189 = dma.hbm_to_vmem [thread:$0]  %s176, 16, %s187, %s93
          %s190 = sadd.s32 %s87, 6
          %s191 = sld [smem:[#allocation5 + %s190]]
          %s192 = smul.addr %s191, 16
          %s193 = scalar_lea.hbm %s1, %s192
          %s194 = sadd.s32 6, %s91
          %s195 = scalar_lea.vmem [#allocation2], %s194
          // Predicated region
          $region41: #{tpu_custom_call.1} parent=15 // pred_check
            _
          $region42: #{tpu_custom_call.1} parent=15 // pred_check_branch
            %197 = sbr.rel target = $region44
          $region43: #{tpu_custom_call.1} parent=15 // pred_region
            %198 = sst [smem:[#allocation10]] [#allocation23]
            %199 = sst [smem:[#allocation11]] [#allocation22]
          $region44: #{tpu_custom_call.1} parent=15 // pred_fallthru
            _
          %201 = shalt.err (0)
          %s203 = sshll.u32 %s195, 4
          %s204 = int_to_ptr.vmem [resolvable:$true] %s203
          %206 = dma.hbm_to_vmem [thread:$0]  %s193, 16, %s204, %s93
          %s207 = sadd.s32 %s87, 7
          %s208 = sld [smem:[#allocation5 + %s207]]
          %s209 = smul.addr %s208, 16
          %s210 = scalar_lea.hbm %s1, %s209
          %s211 = sadd.s32 7, %s91
          %s212 = scalar_lea.vmem [#allocation2], %s211
          // Predicated region
          $region45: #{tpu_custom_call.1} parent=15 // pred_check
            _
          $region46: #{tpu_custom_call.1} parent=15 // pred_check_branch
            %214 = sbr.rel target = $region48
          $region47: #{tpu_custom_call.1} parent=15 // pred_region
            %215 = sst [smem:[#allocation10]] [#allocation25]
            %216 = sst [smem:[#allocation11]] [#allocation24]
          $region48: #{tpu_custom_call.1} parent=15 // pred_fallthru
            _
          %218 = shalt.err (0)
          %s220 = sshll.u32 %s212, 4
          %s221 = int_to_ptr.vmem [resolvable:$true] %s220
          %223 = dma.hbm_to_vmem [thread:$0]  %s210, 16, %s221, %s93
        $region16: #{tpu_custom_call.1} parent=11 // pred_fallthru
          _
        %s224 = sadd.s32 %s22, 1
        %p225 = scmp.lt.s32.totalorder %s224, 2
        // Predicated region
        $region49: #{tpu_custom_call.1} parent=11 // pred_check
          %p226 = pneg %p225
        $region50: #{tpu_custom_call.1} parent=11 // pred_check_branch
          %228 = sbr.rel (%p226) target = $region52
        $region51: #{tpu_custom_call.1} parent=11 // pred_region
          %s229 = sadd.s32 %s69, 1
          %s230 = smul.u32 %s229, 8
          %s231 = sld [smem:[#allocation5 + %s230]]
          %s232 = smul.addr %s231, 16
          %s233 = scalar_lea.hbm %s1, %s232
          %s234 = smul.u32 %s82, 8
          %s235 = scalar_lea.vmem [#allocation2], %s234
          %s236 = scalar_lea.sflag [#allocation3], %s82
          // Predicated region
          $region53: #{tpu_custom_call.1} parent=51 // pred_check
            _
          $region54: #{tpu_custom_call.1} parent=51 // pred_check_branch
            %238 = sbr.rel target = $region56
          $region55: #{tpu_custom_call.1} parent=51 // pred_region
            %239 = sst [smem:[#allocation10]] [#allocation27]
            %240 = sst [smem:[#allocation11]] [#allocation26]
          $region56: #{tpu_custom_call.1} parent=51 // pred_fallthru
            _
          %242 = shalt.err (0)
          %s244 = sshll.u32 %s235, 4
          %s245 = int_to_ptr.vmem [resolvable:$true] %s244
          %247 = dma.hbm_to_vmem [thread:$0]  %s233, 16, %s245, %s236
          %s248 = sadd.s32 %s230, 1
          %s249 = sld [smem:[#allocation5 + %s248]]
          %s250 = smul.addr %s249, 16
          %s251 = scalar_lea.hbm %s1, %s250
          %s252 = sadd.s32 1, %s234
          %s253 = scalar_lea.vmem [#allocation2], %s252
          // Predicated region
          $region57: #{tpu_custom_call.1} parent=51 // pred_check
            _
          $region58: #{tpu_custom_call.1} parent=51 // pred_check_branch
            %255 = sbr.rel target = $region60
          $region59: #{tpu_custom_call.1} parent=51 // pred_region
            %256 = sst [smem:[#allocation10]] [#allocation29]
            %257 = sst [smem:[#allocation11]] [#allocation28]
          $region60: #{tpu_custom_call.1} parent=51 // pred_fallthru
            _
          %259 = shalt.err (0)
          %s261 = sshll.u32 %s253, 4
          %s262 = int_to_ptr.vmem [resolvable:$true] %s261
          %264 = dma.hbm_to_vmem [thread:$0]  %s251, 16, %s262, %s236
          %s265 = sadd.s32 %s230, 2
          %s266 = sld [smem:[#allocation5 + %s265]]
          %s267 = smul.addr %s266, 16
          %s268 = scalar_lea.hbm %s1, %s267
          %s269 = sadd.s32 2, %s234
          %s270 = scalar_lea.vmem [#allocation2], %s269
          // Predicated region
          $region61: #{tpu_custom_call.1} parent=51 // pred_check
            _
          $region62: #{tpu_custom_call.1} parent=51 // pred_check_branch
            %272 = sbr.rel target = $region64
          $region63: #{tpu_custom_call.1} parent=51 // pred_region
            %273 = sst [smem:[#allocation10]] [#allocation31]
            %274 = sst [smem:[#allocation11]] [#allocation30]
          $region64: #{tpu_custom_call.1} parent=51 // pred_fallthru
            _
          %276 = shalt.err (0)
          %s278 = sshll.u32 %s270, 4
          %s279 = int_to_ptr.vmem [resolvable:$true] %s278
          %281 = dma.hbm_to_vmem [thread:$0]  %s268, 16, %s279, %s236
          %s282 = sadd.s32 %s230, 3
          %s283 = sld [smem:[#allocation5 + %s282]]
          %s284 = smul.addr %s283, 16
          %s285 = scalar_lea.hbm %s1, %s284
          %s286 = sadd.s32 3, %s234
          %s287 = scalar_lea.vmem [#allocation2], %s286
          // Predicated region
          $region65: #{tpu_custom_call.1} parent=51 // pred_check
            _
          $region66: #{tpu_custom_call.1} parent=51 // pred_check_branch
            %289 = sbr.rel target = $region68
          $region67: #{tpu_custom_call.1} parent=51 // pred_region
            %290 = sst [smem:[#allocation10]] [#allocation33]
            %291 = sst [smem:[#allocation11]] [#allocation32]
          $region68: #{tpu_custom_call.1} parent=51 // pred_fallthru
            _
          %293 = shalt.err (0)
          %s295 = sshll.u32 %s287, 4
          %s296 = int_to_ptr.vmem [resolvable:$true] %s295
          %298 = dma.hbm_to_vmem [thread:$0]  %s285, 16, %s296, %s236
          %s299 = sadd.s32 %s230, 4
          %s300 = sld [smem:[#allocation5 + %s299]]
          %s301 = smul.addr %s300, 16
          %s302 = scalar_lea.hbm %s1, %s301
          %s303 = sadd.s32 4, %s234
          %s304 = scalar_lea.vmem [#allocation2], %s303
          // Predicated region
          $region69: #{tpu_custom_call.1} parent=51 // pred_check
            _
          $region70: #{tpu_custom_call.1} parent=51 // pred_check_branch
            %306 = sbr.rel target = $region72
          $region71: #{tpu_custom_call.1} parent=51 // pred_region
            %307 = sst [smem:[#allocation10]] [#allocation35]
            %308 = sst [smem:[#allocation11]] [#allocation34]
          $region72: #{tpu_custom_call.1} parent=51 // pred_fallthru
            _
          %310 = shalt.err (0)
          %s312 = sshll.u32 %s304, 4
          %s313 = int_to_ptr.vmem [resolvable:$true] %s312
          %315 = dma.hbm_to_vmem [thread:$0]  %s302, 16, %s313, %s236
          %s316 = sadd.s32 %s230, 5
          %s317 = sld [smem:[#allocation5 + %s316]]
          %s318 = smul.addr %s317, 16
          %s319 = scalar_lea.hbm %s1, %s318
          %s320 = sadd.s32 5, %s234
          %s321 = scalar_lea.vmem [#allocation2], %s320
          // Predicated region
          $region73: #{tpu_custom_call.1} parent=51 // pred_check
            _
          $region74: #{tpu_custom_call.1} parent=51 // pred_check_branch
            %323 = sbr.rel target = $region76
          $region75: #{tpu_custom_call.1} parent=51 // pred_region
            %324 = sst [smem:[#allocation10]] [#allocation37]
            %325 = sst [smem:[#allocation11]] [#allocation36]
          $region76: #{tpu_custom_call.1} parent=51 // pred_fallthru
            _
          %327 = shalt.err (0)
          %s329 = sshll.u32 %s321, 4
          %s330 = int_to_ptr.vmem [resolvable:$true] %s329
          %332 = dma.hbm_to_vmem [thread:$0]  %s319, 16, %s330, %s236
          %s333 = sadd.s32 %s230, 6
          %s334 = sld [smem:[#allocation5 + %s333]]
          %s335 = smul.addr %s334, 16
          %s336 = scalar_lea.hbm %s1, %s335
          %s337 = sadd.s32 6, %s234
          %s338 = scalar_lea.vmem [#allocation2], %s337
          // Predicated region
          $region77: #{tpu_custom_call.1} parent=51 // pred_check
            _
          $region78: #{tpu_custom_call.1} parent=51 // pred_check_branch
            %340 = sbr.rel target = $region80
          $region79: #{tpu_custom_call.1} parent=51 // pred_region
            %341 = sst [smem:[#allocation10]] [#allocation39]
            %342 = sst [smem:[#allocation11]] [#allocation38]
          $region80: #{tpu_custom_call.1} parent=51 // pred_fallthru
            _
          %344 = shalt.err (0)
          %s346 = sshll.u32 %s338, 4
          %s347 = int_to_ptr.vmem [resolvable:$true] %s346
          %349 = dma.hbm_to_vmem [thread:$0]  %s336, 16, %s347, %s236
          %s350 = sadd.s32 %s230, 7
          %s351 = sld [smem:[#allocation5 + %s350]]
          %s352 = smul.addr %s351, 16
          %s353 = scalar_lea.hbm %s1, %s352
          %s354 = sadd.s32 7, %s234
          %s355 = scalar_lea.vmem [#allocation2], %s354
          // Predicated region
          $region81: #{tpu_custom_call.1} parent=51 // pred_check
            _
          $region82: #{tpu_custom_call.1} parent=51 // pred_check_branch
            %357 = sbr.rel target = $region84
          $region83: #{tpu_custom_call.1} parent=51 // pred_region
            %358 = sst [smem:[#allocation10]] [#allocation41]
            %359 = sst [smem:[#allocation11]] [#allocation40]
          $region84: #{tpu_custom_call.1} parent=51 // pred_fallthru
            _
          %361 = shalt.err (0)
          %s363 = sshll.u32 %s355, 4
          %s364 = int_to_ptr.vmem [resolvable:$true] %s363
          %366 = dma.hbm_to_vmem [thread:$0]  %s353, 16, %s364, %s236
        $region52: #{tpu_custom_call.1} parent=11 // pred_fallthru
          _
        %s367 = smul.u32 %s81, 8
        %s368 = scalar_lea.vmem [#allocation2], %s367
        %s369 = scalar_lea.sflag [#allocation3], %s81
        %s370 = smul.u32 8, 1
        %s371 = sshll.u32 %s370, 4
        %372 = dma.done %s369, %s371
        %v373 = vld [vmem:[%s368] sm:$0xff]
        %v374 = vmul.f32 %v373, 5.656854
        %375 = vst [vmem:[%s65] sm:$0xff] %v374
        %s376 = sand.u32 %s38, 1
        %s377 = scalar_lea.sflag [#allocation7], %s376
        %s378 = sand.u32 %s38, 1
        %s379 = smul.addr %s378, 8
        %s380 = scalar_lea.vmem [#allocation6], %s379
        // Predicated region
        $region85: #{tpu_custom_call.1} parent=11 // pred_check
          %p381 = pneg %p44
        $region86: #{tpu_custom_call.1} parent=11 // pred_check_branch
          %383 = sbr.rel (%p381) target = $region88
        $region87: #{tpu_custom_call.1} parent=11 // pred_region
          %s384 = smul.u32 %s21, 2
          %s385 = sadd.s32 %s384, %s22
          %s387 = ssub.s32 128, 128
          %388 = vsyncadd %s377, %s387
          %s389 = smul.addr %s385, 128
          %s390 = scalar_lea.hbm %s2, %s389
          %s392 = sshll.u32 %s380, 4
          %s393 = int_to_ptr.vmem [resolvable:$true] %s392
          %395 = dma.vmem_to_hbm [thread:$0]  %s393, 128, %s390, %s377
        $region88: #{tpu_custom_call.1} parent=11 // pred_fallthru
          _
      $region12: #{tpu_custom_call.1} parent=5 // pred_fallthru
        _
      %p396 = scmp.le.s32.totalorder 1, %s15
      // Predicated region
      $region89: #{tpu_custom_call.1} parent=5 // pred_check
        %p397 = pneg %p396
      $region90: #{tpu_custom_call.1} parent=5 // pred_check_branch
        %399 = sbr.rel (%p397) target = $region92
      $region91: #{tpu_custom_call.1} parent=5 // pred_region
        %s400 = ssub.s32 %s15, 1
        // Predicated region
        $region93: #{tpu_custom_call.1} parent=91 // pred_check
          %p401 = pneg %p50
        $region94: #{tpu_custom_call.1} parent=91 // pred_check_branch
          %403 = sbr.rel (%p401) target = $region96
        $region95: #{tpu_custom_call.1} parent=91 // pred_region
          %s404 = sand.u32 %s41, 1
          %s405 = scalar_lea.sflag [#allocation7], %s404
          %s406 = sand.u32 %s41, 1
          %s407 = smul.addr %s406, 8
          %s408 = scalar_lea.vmem [#allocation6], %s407
          %409 = dma.done %s405, 128
        $region96: #{tpu_custom_call.1} parent=91 // pred_fallthru
          _
      $region92: #{tpu_custom_call.1} parent=5 // pred_fallthru
        _
    $region6: #{tpu_custom_call.1} parent=1 // loop_footer
      %s19 = sadd.s32 1, %s15
    $region7: #{tpu_custom_call.1} parent=1 // loop_footer_branch
      %14 = sbr.rel target = $region3
    $region8: #{tpu_custom_call.1} parent=1 // loop_exit
      _
    %410 = vsyncpa [#allocation7], 1
    %s411 = scalar_lea.sflag [#allocation7], 1
    %412 = vsyncpa %s411, 1
  %413 = vsyncmov [#allocation3]
  %s414 = vpop.sfrf %413
  %p415 = scmp.eq.s32.totalorder %s414, 0
  %p416 = pneg %p415
  %418 = shalt.err (%p416)
  %s419 = scalar_lea.sflag [#allocation3], 1
  %420 = vsyncmov %s419
  %s421 = vpop.sfrf %420
  %p422 = scmp.eq.s32.totalorder %s421, 0
  %p423 = pneg %p422
  %425 = shalt.err (%p423)

</llo_original>
